<compile_context>
chip_gen: v7x
topology: tpu7x:2x2x1
jax: 0.10.0
libtpu: 0.0.40
codegen_flags: <defaults>
</compile_context>

<pallas_src>
import numpy as np

import jax
import jax.numpy as jnp
from jax.experimental import pallas as pl
from jax.experimental.pallas import tpu as pltpu

EPS = 1e-5  # PyTorch nn.LayerNorm default


def _patch_merging_kernel(x_ref, w_ref, b_ref, o_ref):
    """One row-tile of merged tokens.

    x_ref : (tr, 2, Wh, 2C) input slab: tr merged rows, both h-parities; the
                            last axis is [x(pw=0) | x(pw=1)] = 2C features.
    w_ref : (4C, 2C) reduction weight with LayerNorm gamma folded in, rows in
                     the kernel's natural feature order [x0, x2, x1, x3].
    b_ref : (1, 2C)  precomputed  beta @ W  (f32).
    o_ref : (tr*Wh, 2C) output tokens (row-major over (tr, Wh)).
    """
    tr, _, wh, c2 = x_ref.shape
    rows = tr * wh

    xall = x_ref[...]
    # Note: the (tr, Wh, 2C) -> (tr*Wh, 2C) flatten may relayout when Wh is
    # not a multiple of the sublane tile (Wh = 7/14/28 in real Swin stages).
    # A rank-3 dot_general would avoid it but is not reliably lowered by
    # Mosaic, so we keep the known-good 2-D MXU form.
    e0 = xall[:, 0, :, :].reshape(rows, c2)      # [x0 | x2]
    e1 = xall[:, 1, :, :].reshape(rows, c2)      # [x1 | x3]

    # ---- LayerNorm statistics over the full 4C features, in f32 ----
    f0 = e0.astype(jnp.float32)
    f1 = e1.astype(jnp.float32)
    inv_n = 1.0 / (2 * c2)                       # 1 / 4C
    mean = (jnp.sum(f0, axis=-1, keepdims=True)
            + jnp.sum(f1, axis=-1, keepdims=True)) * inv_n
    c0 = f0 - mean
    c1 = f1 - mean
    var = (jnp.sum(c0 * c0, axis=-1, keepdims=True)
           + jnp.sum(c1 * c1, axis=-1, keepdims=True)) * inv_n
    rstd = jax.lax.rsqrt(var + EPS)

    # ---- Linear 4C -> 2C with gamma folded into the weight ----
    #   out = rstd * (c @ (gamma * W)) + beta @ W
    # MXU operands in the matmul dtype (bf16 fast path), f32 accumulation.
    w = w_ref[...]
    mdt = w.dtype
    acc = jnp.dot(c0.astype(mdt), w[:c2, :], preferred_element_type=jnp.float32)
    acc = acc + jnp.dot(c1.astype(mdt), w[c2:, :],
                        preferred_element_type=jnp.float32)
    out = acc * rstd + b_ref[...].astype(jnp.float32)
    o_ref[...] = out.astype(o_ref.dtype)


def _vmem_capacity_bytes():
    try:
        return int(pltpu.get_tpu_info().vmem_capacity_bytes)
    except Exception:
        return 64 * 1024 * 1024       # conservative (v7x-sized) fallback


def _pick_row_tile(R, Wh, C, x_itemsize, mm_itemsize, budget_bytes):
    """Largest divisor of R (flattened B*Hh rows) whose working set fits the
    budget, preferring a sublane-aligned output block and an even, >=4-step
    grid (keeps both v7x TensorCores and the DMA pipeline busy)."""
    C2, C4 = 2 * C, 4 * C
    bytes_per_row = Wh * (2 * C4 * x_itemsize       # double-buffered input slab
                          + 2 * C2 * x_itemsize     # double-buffered output slab
                          + 6 * C2 * 4              # live f32 intermediates
                          + 2 * C2 * mm_itemsize)   # MXU operand casts
    fit = max(budget_bytes // bytes_per_row, 1)
    divisors = [d for d in range(1, R + 1) if R % d == 0]
    cands = [d for d in divisors if d <= fit] or [1]

    def score(d):
        steps = R // d
        return (
            (d * Wh) % 8 == 0 or d == R,     # aligned output block rows
            steps >= 2,                       # >=2 steps (2nd core / pipelining)
            steps % 2 == 0 or steps == 1,     # even split across v7x cores
            steps >= 4,
            min(d * Wh, 1024),                # deep MXU M dimension
            d,                                # then: biggest block
        )

    return max(cands, key=score)


def patch_merging(x, gamma, beta, w_t, input_resolution, *, matmul_dtype=None):
    """
    x     : (B, H*W, C)  same semantics as the PyTorch module input.
    gamma : (4*C,)       LayerNorm weight.
    beta  : (4*C,)       LayerNorm bias.
    w_t   : (4*C, 2*C)   reduction weight transposed to (in, out), i.e.
                         nn.Linear(4C, 2C, bias=False).weight.T.
    matmul_dtype : dtype of the MXU operands.  Default: bf16 when x is f32
                   (native MXU fast path), else x.dtype.  LayerNorm stats and
                   the accumulator are always f32.
    """
    H, W = input_resolution
    B, L, C = x.shape
    assert L == H * W, "input feature has wrong size"
    assert H % 2 == 0 and W % 2 == 0, f"x size ({H}*{W}) are not even."
    Hh, Wh = H // 2, W // 2
    C2, C4 = 2 * C, 4 * C

    if matmul_dtype is None:
        matmul_dtype = jnp.bfloat16 if x.dtype == jnp.float32 else x.dtype
    matmul_dtype = jnp.dtype(matmul_dtype)

    # Free row-major view: (B*Hh, 2, Wh, 2C).  Axis 1 is the h-parity; the
    # last axis holds the two w-parity neighbours back-to-back, so the kernel
    # feature order is [x0 | x2] / [x1 | x3].
    R = B * Hh
    x_in = x.reshape(R, 2, Wh, C2)

    # Permute params once to the kernel's natural order [x0, x2, x1, x3]
    # (LayerNorm stats are permutation invariant) and fold gamma/beta into
    # the reduction weight.
    perm = np.concatenate([np.arange(0, C), np.arange(2 * C, 3 * C),
                           np.arange(C, 2 * C), np.arange(3 * C, 4 * C)])
    gamma_k = gamma[perm].astype(jnp.float32)
    beta_k = beta[perm].astype(jnp.float32)
    w_perm = w_t[perm, :].astype(jnp.float32)
    w_fold = (gamma_k[:, None] * w_perm).astype(matmul_dtype)          # (4C, 2C)
    bias_fold = (beta_k @ w_perm).reshape(1, C2).astype(jnp.float32)   # (1, 2C)

    # ---- capacity-derived VMEM limit + honest row-tile selection ----
    vmem_cap = _vmem_capacity_bytes()
    vmem_limit = (3 * vmem_cap) // 4              # leave Mosaic scratch headroom
    param_bytes = 2 * (C4 * C2 * matmul_dtype.itemsize + C2 * 4)   # worst case 2 bufs
    budget = max(int(0.6 * vmem_limit) - param_bytes, 1 << 20)
    tr = _pick_row_tile(R, Wh, C, x.dtype.itemsize, matmul_dtype.itemsize, budget)
    grid = (R // tr,)

    M = R * Wh                                    # total merged tokens
    cost = pl.CostEstimate(
        flops=2 * M * C4 * C2,
        transcendentals=M,
        bytes_accessed=(M * C4 * x.dtype.itemsize          # activations in
                        + M * C2 * x.dtype.itemsize        # activations out
                        + C4 * C2 * matmul_dtype.itemsize  # folded weight
                        + C2 * 4),                         # folded bias
    )

    def build(single_buffer_params):
        pmode = ({"pipeline_mode": pl.Buffered(1)} if single_buffer_params else {})
        return pl.pallas_call(
            _patch_merging_kernel,
            out_shape=jax.ShapeDtypeStruct((M, C2), x.dtype),
            grid_spec=pltpu.PrefetchScalarGridSpec(
                num_scalar_prefetch=0,
                grid=grid,
                in_specs=[
                    # one contiguous slab per step: tr merged rows, both parities
                    pl.BlockSpec((tr, 2, Wh, C2), lambda i: (i, 0, 0, 0)),
                    pl.BlockSpec((C4, C2), lambda i: (0, 0), **pmode),
                    pl.BlockSpec((1, C2), lambda i: (0, 0), **pmode),
                ],
                # lane-dense 2-D output: tr*Wh tokens x 2C features per step
                out_specs=pl.BlockSpec((tr * Wh, C2), lambda i: (i, 0)),
            ),
            compiler_params=pltpu.CompilerParams(
                dimension_semantics=("parallel",),
                vmem_limit_bytes=int(vmem_limit),
            ),
            cost_estimate=cost,
        )

    try:
        out2d = build(True)(x_in, w_fold, bias_fold)
        out2d = jax.block_until_ready(out2d)
    except Exception:
        # pipeline_mode=pl.Buffered(1) not supported by this Pallas build ->
        # fall back to default double-buffered parameter blocks.
        out2d = build(False)(x_in, w_fold, bias_fold)

    return out2d.reshape(B, Hh * Wh, C2)


def _reference(x, gamma, beta, w_t, input_resolution):
    """Pure-JAX reference matching the PyTorch module exactly."""
    H, W = input_resolution
    B, L, C = x.shape
    xr = x.reshape(B, H, W, C)
    x0 = xr[:, 0::2, 0::2, :]
    x1 = xr[:, 1::2, 0::2, :]
    x2 = xr[:, 0::2, 1::2, :]
    x3 = xr[:, 1::2, 1::2, :]
    xm = jnp.concatenate([x0, x1, x2, x3], axis=-1).reshape(B, -1, 4 * C)
    mean = jnp.mean(xm, axis=-1, keepdims=True)
    var = jnp.mean((xm - mean) ** 2, axis=-1, keepdims=True)
    xn = (xm - mean) * jax.lax.rsqrt(var + EPS)
    y = xn * gamma + beta
    return jnp.einsum("blk,kn->bln", y, w_t)


if __name__ == "__main__":
    # Small shapes consistent with the module: B=2, dim=4, resolution 16x16.
    B, H, W, C = 2, 16, 16, 4
    key = jax.random.PRNGKey(0)
    kx, kw = jax.random.split(key)

    x = jax.random.normal(kx, (B, H * W, C), dtype=jnp.float32)

    # Deterministic, non-uniform parameters (exercises the permutation + fold).
    gamma = (jnp.arange(4 * C, dtype=jnp.float32) % 5) * 0.1 + 0.8
    beta = (jnp.arange(4 * C, dtype=jnp.float32) % 3) * 0.05 - 0.05
    # nn.Linear(4C, 2C, bias=False).weight is (2C, 4C); pass its transpose.
    w_t = jax.random.normal(kw, (4 * C, 2 * C), dtype=jnp.float32) * 0.02

    ref = _reference(x, gamma, beta, w_t, (H, W))

    # f32 MXU path: tight check against the reference.
    out = patch_merging(x, gamma, beta, w_t, (H, W), matmul_dtype=jnp.float32)
    out = jax.block_until_ready(out)
    assert out.shape == (B, (H // 2) * (W // 2), 2 * C), out.shape
    assert jnp.allclose(out, ref, atol=1e-4, rtol=1e-4), "f32 path mismatch"

    # Default fast path (bf16 MXU operands, f32 stats/accumulation): loose check.
    out_fast = patch_merging(x, gamma, beta, w_t, (H, W))
    out_fast = jax.block_until_ready(out_fast)
    assert jnp.allclose(out_fast, ref, atol=2e-2, rtol=2e-2), "bf16 path mismatch"

    print("KERNEL_OK")
</pallas_src>

<mosaic_0001>
module attributes {stable_mosaic.version = 11 : i64} {
  func.func @_patch_merging_kernel(%arg0: i32, %arg1: memref<4x2x8x8xf32, #tpu.memory_space<vmem>>, %arg2: memref<16x8xf32, #tpu.memory_space<vmem>>, %arg3: memref<1x8xf32, #tpu.memory_space<vmem>>, %arg4: memref<32x8xf32, #tpu.memory_space<vmem>>) attributes {dimension_semantics = [#tpu.dimension_semantics<parallel>], iteration_bounds = array<i64: 4>, scalar_prefetch = 0 : i64, scratch_operands = 0 : i64, tpu.core_type = #tpu.core_type<tc>, window_params = [{transform_indices = @transform_0, window_bounds = array<i64: 4, 2, 8, 8>}, {pipeline_mode = #tpu.pipeline_mode<synchronous>, transform_indices = @transform_1, window_bounds = array<i64: 16, 8>}, {pipeline_mode = #tpu.pipeline_mode<synchronous>, transform_indices = @transform_2, window_bounds = array<i64: 1, 8>}, {transform_indices = @transform_3, window_bounds = array<i64: 32, 8>}]} {
    %c0 = arith.constant 0 : index
    %c0_0 = arith.constant 0 : index
    %c0_1 = arith.constant 0 : index
    %c0_2 = arith.constant 0 : index
    %0 = vector.load %arg1[%c0, %c0_0, %c0_1, %c0_2] : memref<4x2x8x8xf32, #tpu.memory_space<vmem>>, vector<4x2x8x8xf32>
    %1 = vector.extract_strided_slice %0 {offsets = [0, 0, 0, 0], sizes = [4, 1, 8, 8], strides = [1, 1, 1, 1]} : vector<4x2x8x8xf32> to vector<4x1x8x8xf32>
    %2 = vector.shape_cast %1 : vector<4x1x8x8xf32> to vector<4x8x8xf32>
    %3 = vector.shape_cast %2 : vector<4x8x8xf32> to vector<32x8xf32>
    %4 = vector.extract_strided_slice %0 {offsets = [0, 1, 0, 0], sizes = [4, 1, 8, 8], strides = [1, 1, 1, 1]} : vector<4x2x8x8xf32> to vector<4x1x8x8xf32>
    %5 = vector.shape_cast %4 : vector<4x1x8x8xf32> to vector<4x8x8xf32>
    %6 = vector.shape_cast %5 : vector<4x8x8xf32> to vector<32x8xf32>
    %cst = arith.constant dense<0.000000e+00> : vector<32xf32>
    %7 = vector.multi_reduction <add>, %3, %cst [1] : vector<32x8xf32> to vector<32xf32>
    %8 = vector.shape_cast %7 : vector<32xf32> to vector<32x1xf32>
    %cst_3 = arith.constant dense<0.000000e+00> : vector<32xf32>
    %9 = vector.multi_reduction <add>, %6, %cst_3 [1] : vector<32x8xf32> to vector<32xf32>
    %10 = vector.shape_cast %9 : vector<32xf32> to vector<32x1xf32>
    %11 = arith.addf %8, %10 : vector<32x1xf32>
    %cst_4 = arith.constant 6.250000e-02 : f32
    %12 = vector.broadcast %cst_4 : f32 to vector<32x1xf32>
    %13 = arith.mulf %11, %12 : vector<32x1xf32>
    %14 = vector.broadcast %13 : vector<32x1xf32> to vector<32x8xf32>
    %15 = arith.subf %3, %14 : vector<32x8xf32>
    %16 = vector.broadcast %13 : vector<32x1xf32> to vector<32x8xf32>
    %17 = arith.subf %6, %16 : vector<32x8xf32>
    %18 = arith.mulf %15, %15 : vector<32x8xf32>
    %cst_5 = arith.constant dense<0.000000e+00> : vector<32xf32>
    %19 = vector.multi_reduction <add>, %18, %cst_5 [1] : vector<32x8xf32> to vector<32xf32>
    %20 = vector.shape_cast %19 : vector<32xf32> to vector<32x1xf32>
    %21 = arith.mulf %17, %17 : vector<32x8xf32>
    %cst_6 = arith.constant dense<0.000000e+00> : vector<32xf32>
    %22 = vector.multi_reduction <add>, %21, %cst_6 [1] : vector<32x8xf32> to vector<32xf32>
    %23 = vector.shape_cast %22 : vector<32xf32> to vector<32x1xf32>
    %24 = arith.addf %20, %23 : vector<32x1xf32>
    %cst_7 = arith.constant 6.250000e-02 : f32
    %25 = vector.broadcast %cst_7 : f32 to vector<32x1xf32>
    %26 = arith.mulf %24, %25 : vector<32x1xf32>
    %cst_8 = arith.constant 9.99999974E-6 : f32
    %27 = vector.broadcast %cst_8 : f32 to vector<32x1xf32>
    %28 = arith.addf %26, %27 : vector<32x1xf32>
    %29 = math.rsqrt %28 : vector<32x1xf32>
    %c0_9 = arith.constant 0 : index
    %c0_10 = arith.constant 0 : index
    %30 = vector.load %arg2[%c0_9, %c0_10] : memref<16x8xf32, #tpu.memory_space<vmem>>, vector<16x8xf32>
    %31 = vector.extract_strided_slice %30 {offsets = [0, 0], sizes = [8, 8], strides = [1, 1]} : vector<16x8xf32> to vector<8x8xf32>
    %cst_11 = arith.constant dense<0.000000e+00> : vector<32x8xf32>
    %32 = tpu.matmul %15, %31, %cst_11 {dimension_numbers = #tpu.dot_dimension_numbers<[1], [0], [0], [1], [0, 0, 1, 1], [], []>} : vector<32x8xf32>, vector<8x8xf32>, vector<32x8xf32> -> vector<32x8xf32>
    %33 = vector.extract_strided_slice %30 {offsets = [8, 0], sizes = [8, 8], strides = [1, 1]} : vector<16x8xf32> to vector<8x8xf32>
    %cst_12 = arith.constant dense<0.000000e+00> : vector<32x8xf32>
    %34 = tpu.matmul %17, %33, %cst_12 {dimension_numbers = #tpu.dot_dimension_numbers<[1], [0], [0], [1], [0, 0, 1, 1], [], []>} : vector<32x8xf32>, vector<8x8xf32>, vector<32x8xf32> -> vector<32x8xf32>
    %35 = arith.addf %32, %34 : vector<32x8xf32>
    %36 = vector.broadcast %29 : vector<32x1xf32> to vector<32x8xf32>
    %37 = arith.mulf %35, %36 : vector<32x8xf32>
    %c0_13 = arith.constant 0 : index
    %c0_14 = arith.constant 0 : index
    %38 = vector.load %arg3[%c0_13, %c0_14] : memref<1x8xf32, #tpu.memory_space<vmem>>, vector<1x8xf32>
    %39 = vector.broadcast %38 : vector<1x8xf32> to vector<32x8xf32>
    %40 = arith.addf %37, %39 : vector<32x8xf32>
    %c0_15 = arith.constant 0 : index
    %c0_16 = arith.constant 0 : index
    %41 = vector.load %arg4[%c0_15, %c0_16] : memref<32x8xf32, #tpu.memory_space<vmem>>, vector<32x8xf32>
    tpu.vector_store %arg4[%c0_15, %c0_16], %40 {strides = array<i32>} : memref<32x8xf32, #tpu.memory_space<vmem>>, vector<32x8xf32>,
    return
  }
  func.func @transform_0(%arg0: i32) -> (i32, i32, i32, i32) {
    %c0_i32 = arith.constant 0 : i32
    %c0_i32_0 = arith.constant 0 : i32
    %c0_i32_1 = arith.constant 0 : i32
    %c0_i32_2 = arith.constant 0 : i32
    return %arg0, %c0_i32, %c0_i32_0, %c0_i32_1 : i32, i32, i32, i32
  }
  func.func @transform_1(%arg0: i32) -> (i32, i32) {
    %c0_i32 = arith.constant 0 : i32
    %c0_i32_0 = arith.constant 0 : i32
    %c0_i32_1 = arith.constant 0 : i32
    return %c0_i32, %c0_i32_0 : i32, i32
  }
  func.func @transform_2(%arg0: i32) -> (i32, i32) {
    %c0_i32 = arith.constant 0 : i32
    %c0_i32_0 = arith.constant 0 : i32
    %c0_i32_1 = arith.constant 0 : i32
    return %c0_i32, %c0_i32_0 : i32, i32
  }
  func.func @transform_3(%arg0: i32) -> (i32, i32) {
    %c0_i32 = arith.constant 0 : i32
    %c0_i32_0 = arith.constant 0 : i32
    return %arg0, %c0_i32 : i32, i32
  }
}

module attributes {stable_mosaic.version = 11 : i64} {
  func.func @_patch_merging_kernel(%arg0: i32, %arg1: memref<4x2x8x8xf32, #tpu.memory_space<vmem>>, %arg2: memref<16x8xf32, #tpu.memory_space<vmem>>, %arg3: memref<1x8xf32, #tpu.memory_space<vmem>>, %arg4: memref<32x8xf32, #tpu.memory_space<vmem>>) attributes {dimension_semantics = [#tpu.dimension_semantics<parallel>], iteration_bounds = array<i64: 4>, scalar_prefetch = 0 : i64, scratch_operands = 0 : i64, tpu.core_type = #tpu.core_type<tc>, window_params = [{transform_indices = @transform_0, window_bounds = array<i64: 4, 2, 8, 8>}, {pipeline_mode = #tpu.pipeline_mode<synchronous>, transform_indices = @transform_1, window_bounds = array<i64: 16, 8>}, {pipeline_mode = #tpu.pipeline_mode<synchronous>, transform_indices = @transform_2, window_bounds = array<i64: 1, 8>}, {transform_indices = @transform_3, window_bounds = array<i64: 32, 8>}]} {
    %c0 = arith.constant 0 : index
    %c0_0 = arith.constant 0 : index
    %c0_1 = arith.constant 0 : index
    %c0_2 = arith.constant 0 : index
    %0 = vector.load %arg1[%c0, %c0_0, %c0_1, %c0_2] : memref<4x2x8x8xf32, #tpu.memory_space<vmem>>, vector<4x2x8x8xf32>
    %1 = vector.extract_strided_slice %0 {offsets = [0, 0, 0, 0], sizes = [4, 1, 8, 8], strides = [1, 1, 1, 1]} : vector<4x2x8x8xf32> to vector<4x1x8x8xf32>
    %2 = vector.shape_cast %1 : vector<4x1x8x8xf32> to vector<4x8x8xf32>
    %3 = vector.shape_cast %2 : vector<4x8x8xf32> to vector<32x8xf32>
    %4 = vector.extract_strided_slice %0 {offsets = [0, 1, 0, 0], sizes = [4, 1, 8, 8], strides = [1, 1, 1, 1]} : vector<4x2x8x8xf32> to vector<4x1x8x8xf32>
    %5 = vector.shape_cast %4 : vector<4x1x8x8xf32> to vector<4x8x8xf32>
    %6 = vector.shape_cast %5 : vector<4x8x8xf32> to vector<32x8xf32>
    %cst = arith.constant dense<0.000000e+00> : vector<32xf32>
    %7 = vector.multi_reduction <add>, %3, %cst [1] : vector<32x8xf32> to vector<32xf32>
    %8 = vector.shape_cast %7 : vector<32xf32> to vector<32x1xf32>
    %cst_3 = arith.constant dense<0.000000e+00> : vector<32xf32>
    %9 = vector.multi_reduction <add>, %6, %cst_3 [1] : vector<32x8xf32> to vector<32xf32>
    %10 = vector.shape_cast %9 : vector<32xf32> to vector<32x1xf32>
    %11 = arith.addf %8, %10 : vector<32x1xf32>
    %cst_4 = arith.constant 6.250000e-02 : f32
    %12 = vector.broadcast %cst_4 : f32 to vector<32x1xf32>
    %13 = arith.mulf %11, %12 : vector<32x1xf32>
    %14 = vector.broadcast %13 : vector<32x1xf32> to vector<32x8xf32>
    %15 = arith.subf %3, %14 : vector<32x8xf32>
    %16 = vector.broadcast %13 : vector<32x1xf32> to vector<32x8xf32>
    %17 = arith.subf %6, %16 : vector<32x8xf32>
    %18 = arith.mulf %15, %15 : vector<32x8xf32>
    %cst_5 = arith.constant dense<0.000000e+00> : vector<32xf32>
    %19 = vector.multi_reduction <add>, %18, %cst_5 [1] : vector<32x8xf32> to vector<32xf32>
    %20 = vector.shape_cast %19 : vector<32xf32> to vector<32x1xf32>
    %21 = arith.mulf %17, %17 : vector<32x8xf32>
    %cst_6 = arith.constant dense<0.000000e+00> : vector<32xf32>
    %22 = vector.multi_reduction <add>, %21, %cst_6 [1] : vector<32x8xf32> to vector<32xf32>
    %23 = vector.shape_cast %22 : vector<32xf32> to vector<32x1xf32>
    %24 = arith.addf %20, %23 : vector<32x1xf32>
    %cst_7 = arith.constant 6.250000e-02 : f32
    %25 = vector.broadcast %cst_7 : f32 to vector<32x1xf32>
    %26 = arith.mulf %24, %25 : vector<32x1xf32>
    %cst_8 = arith.constant 9.99999974E-6 : f32
    %27 = vector.broadcast %cst_8 : f32 to vector<32x1xf32>
    %28 = arith.addf %26, %27 : vector<32x1xf32>
    %29 = math.rsqrt %28 : vector<32x1xf32>
    %c0_9 = arith.constant 0 : index
    %c0_10 = arith.constant 0 : index
    %30 = vector.load %arg2[%c0_9, %c0_10] : memref<16x8xf32, #tpu.memory_space<vmem>>, vector<16x8xf32>
    %31 = vector.extract_strided_slice %30 {offsets = [0, 0], sizes = [8, 8], strides = [1, 1]} : vector<16x8xf32> to vector<8x8xf32>
    %cst_11 = arith.constant dense<0.000000e+00> : vector<32x8xf32>
    %32 = tpu.matmul %15, %31, %cst_11 {dimension_numbers = #tpu.dot_dimension_numbers<[1], [0], [0], [1], [0, 0, 1, 1], [], []>} : vector<32x8xf32>, vector<8x8xf32>, vector<32x8xf32> -> vector<32x8xf32>
    %33 = vector.extract_strided_slice %30 {offsets = [8, 0], sizes = [8, 8], strides = [1, 1]} : vector<16x8xf32> to vector<8x8xf32>
    %cst_12 = arith.constant dense<0.000000e+00> : vector<32x8xf32>
    %34 = tpu.matmul %17, %33, %cst_12 {dimension_numbers = #tpu.dot_dimension_numbers<[1], [0], [0], [1], [0, 0, 1, 1], [], []>} : vector<32x8xf32>, vector<8x8xf32>, vector<32x8xf32> -> vector<32x8xf32>
    %35 = arith.addf %32, %34 : vector<32x8xf32>
    %36 = vector.broadcast %29 : vector<32x1xf32> to vector<32x8xf32>
    %37 = arith.mulf %35, %36 : vector<32x8xf32>
    %c0_13 = arith.constant 0 : index
    %c0_14 = arith.constant 0 : index
    %38 = vector.load %arg3[%c0_13, %c0_14] : memref<1x8xf32, #tpu.memory_space<vmem>>, vector<1x8xf32>
    %39 = vector.broadcast %38 : vector<1x8xf32> to vector<32x8xf32>
    %40 = arith.addf %37, %39 : vector<32x8xf32>
    %c0_15 = arith.constant 0 : index
    %c0_16 = arith.constant 0 : index
    %41 = vector.load %arg4[%c0_15, %c0_16] : memref<32x8xf32, #tpu.memory_space<vmem>>, vector<32x8xf32>
    tpu.vector_store %arg4[%c0_15, %c0_16], %40 {strides = array<i32>} : memref<32x8xf32, #tpu.memory_space<vmem>>, vector<32x8xf32>,
    return
  }
  func.func @transform_0(%arg0: i32) -> (i32, i32, i32, i32) {
    %c0_i32 = arith.constant 0 : i32
    %c0_i32_0 = arith.constant 0 : i32
    %c0_i32_1 = arith.constant 0 : i32
    %c0_i32_2 = arith.constant 0 : i32
    return %arg0, %c0_i32, %c0_i32_0, %c0_i32_1 : i32, i32, i32, i32
  }
  func.func @transform_1(%arg0: i32) -> (i32, i32) {
    %c0_i32 = arith.constant 0 : i32
    %c0_i32_0 = arith.constant 0 : i32
    %c0_i32_1 = arith.constant 0 : i32
    return %c0_i32, %c0_i32_0 : i32, i32
  }
  func.func @transform_2(%arg0: i32) -> (i32, i32) {
    %c0_i32 = arith.constant 0 : i32
    %c0_i32_0 = arith.constant 0 : i32
    %c0_i32_1 = arith.constant 0 : i32
    return %c0_i32, %c0_i32_0 : i32, i32
  }
  func.func @transform_3(%arg0: i32) -> (i32, i32) {
    %c0_i32 = arith.constant 0 : i32
    %c0_i32_0 = arith.constant 0 : i32
    return %arg0, %c0_i32 : i32, i32
  }
}

</mosaic_0001>

<llo_original>
// kernel: tpu_custom_call.1
$region0: #{tpu_custom_call.1}
  #allocation0 [shape = 'u32[]', space=smem, size = 0x4, offset = 0x4, fixed_abs, tag = 'smem constant byte address 0x4 - core index']
  #allocation1 [shape = 'u32[144,128]{1,0:T(1,128)}', space=vmem, size = 0x12000, scoped, tag = 'internal scratch']
  %s0 = inlined_call_operand.vmem [shape: f32[16,2,8,8], index: 0, kind: input, shape index: {}]
  %s1 = inlined_call_operand.vmem [shape: f32[16,8], index: 1, kind: input, shape index: {}]
  %s2 = inlined_call_operand.vmem [shape: f32[1,8], index: 2, kind: input, shape index: {}]
  %s3 = inlined_call_operand.vmem [shape: f32[128,8], index: 3, kind: output, shape index: {}]
  %s4 = sld [smem:[#allocation0]]
  $region45: #{tpu_custom_call.1} parent=0
    _
  %s6 = ssub.s32 1, %s4
  %s7 = scalar_select 0, %s6, %s4
  loop: start=0, step=1, limit=6
  $region2: #{tpu_custom_call.1} parent=0 // loop_pre_header
    _
  $region3: #{tpu_custom_call.1} parent=0 // loop_header
    %s9 = sphi 0, %s13
    %p10 = scmp.ge.s32.totalorder %s9, 6
    %s19 = sphi 0, %s21
    %s22 = sphi 0, %s19
    %s23 = sphi 0, %s22
    %s39 = sphi 0, %s23
    %s43 = sphi 0, %s43
    %s45 = sphi 0, %s43
    %s46 = sphi 0, %s45
    %s60 = sphi 0, %s46
    %s64 = sphi 0, %s64
    %s66 = sphi 0, %s64
    %s67 = sphi 0, %s66
    %s81 = sphi 0, %s67
    %s87 = sphi 0, %s89
    %s90 = sphi 0, %s87
    %s91 = sphi 0, %s90
    %s107 = sphi 0, %s91
  $region4: #{tpu_custom_call.1} parent=0 // loop_header_branch
    %12 = sbr.rel (%p10) target = $region8
  $region5: #{tpu_custom_call.1} parent=0 // loop_body
    %s14 = ssub.s32 %s9, 1
    %s15 = ssub.s32 %s9, 2
    %s16 = sadd.s32 %s9, 1
    %s17 = ssub.s32 %s9, %s16
    %p18 = scmp.eq.s32.totalorder %s17, 0
    %s20 = sadd.s32 %s19, 1
    %s21 = scalar_select %p18, %s19, %s20
    %p24 = pneg %p18
    %p25 = scmp.eq.s32.totalorder %s9, 3
    %p26 = por %p24, %p25
    %p27 = scmp.ne.s32.totalorder %s19, %s22
    %p28 = scmp.eq.s32.totalorder %s9, 0
    %p29 = por %p27, %p28
    %p30 = scmp.ne.s32.totalorder %s19, %s22
    %p31 = scmp.eq.s32.totalorder %s14, 3
    %p32 = por %p30, %p31
    %p33 = scmp.ne.s32.totalorder %s22, %s23
    %p34 = scmp.eq.s32.totalorder %s14, 0
    %p35 = por %p33, %p34
    %p36 = scmp.ne.s32.totalorder %s22, %s23
    %p37 = scmp.eq.s32.totalorder %s15, 3
    %p38 = por %p36, %p37
    %p40 = scmp.ne.s32.totalorder %s23, %s39
    %p41 = scmp.eq.s32.totalorder %s15, 0
    %p42 = por %p40, %p41
    %s44 = sadd.s32 %s43, 1
    %p47 = scmp.eq.s32.totalorder %s9, 3
    %p48 = scmp.ne.s32.totalorder %s43, %s45
    %p49 = scmp.eq.s32.totalorder %s9, 0
    %p50 = por %p48, %p49
    %p51 = scmp.ne.s32.totalorder %s43, %s45
    %p52 = scmp.eq.s32.totalorder %s14, 3
    %p53 = por %p51, %p52
    %p54 = scmp.ne.s32.totalorder %s45, %s46
    %p55 = scmp.eq.s32.totalorder %s14, 0
    %p56 = por %p54, %p55
    %p57 = scmp.ne.s32.totalorder %s45, %s46
    %p58 = scmp.eq.s32.totalorder %s15, 3
    %p59 = por %p57, %p58
    %p61 = scmp.ne.s32.totalorder %s46, %s60
    %p62 = scmp.eq.s32.totalorder %s15, 0
    %p63 = por %p61, %p62
    %s65 = sadd.s32 %s64, 1
    %p68 = scmp.eq.s32.totalorder %s9, 3
    %p69 = scmp.ne.s32.totalorder %s64, %s66
    %p70 = scmp.eq.s32.totalorder %s9, 0
    %p71 = por %p69, %p70
    %p72 = scmp.ne.s32.totalorder %s64, %s66
    %p73 = scmp.eq.s32.totalorder %s14, 3
    %p74 = por %p72, %p73
    %p75 = scmp.ne.s32.totalorder %s66, %s67
    %p76 = scmp.eq.s32.totalorder %s14, 0
    %p77 = por %p75, %p76
    %p78 = scmp.ne.s32.totalorder %s66, %s67
    %p79 = scmp.eq.s32.totalorder %s15, 3
    %p80 = por %p78, %p79
    %p82 = scmp.ne.s32.totalorder %s67, %s81
    %p83 = scmp.eq.s32.totalorder %s15, 0
    %p84 = por %p82, %p83
    %s85 = ssub.s32 %s9, %s16
    %p86 = scmp.eq.s32.totalorder %s85, 0
    %s88 = sadd.s32 %s87, 1
    %s89 = scalar_select %p86, %s87, %s88
    %p92 = pneg %p86
    %p93 = scmp.eq.s32.totalorder %s9, 3
    %p94 = por %p92, %p93
    %p95 = scmp.ne.s32.totalorder %s87, %s90
    %p96 = scmp.eq.s32.totalorder %s9, 0
    %p97 = por %p95, %p96
    %p98 = scmp.ne.s32.totalorder %s87, %s90
    %p99 = scmp.eq.s32.totalorder %s14, 3
    %p100 = por %p98, %p99
    %p101 = scmp.ne.s32.totalorder %s90, %s91
    %p102 = scmp.eq.s32.totalorder %s14, 0
    %p103 = por %p101, %p102
    %p104 = scmp.ne.s32.totalorder %s90, %s91
    %p105 = scmp.eq.s32.totalorder %s15, 3
    %p106 = por %p104, %p105
    %p108 = scmp.ne.s32.totalorder %s91, %s107
    %p109 = scmp.eq.s32.totalorder %s15, 0
    %p110 = por %p108, %p109
    %p111 = scmp.le.s32.totalorder 1, %s9
    %p112 = scmp.lt.s32.totalorder %s9, 5
    %p113 = pnand %p111, %p112
    %p114 = pneg %p113
    // Predicated region
    $region9: #{tpu_custom_call.1} parent=5 // pred_check
      _
    $region10: #{tpu_custom_call.1} parent=5 // pred_check_branch
      %116 = sbr.rel (%p113) target = $region12
    $region11: #{tpu_custom_call.1} parent=5 // pred_region
      %s117 = ssub.s32 %s9, 1
      // Predicated region
      $region13: #{tpu_custom_call.1} parent=11 // pred_check
        %p118 = pneg %p56
      $region14: #{tpu_custom_call.1} parent=11 // pred_check_branch
        %120 = sbr.rel (%p118) target = $region16
      $region15: #{tpu_custom_call.1} parent=11 // pred_region
        _
      $region16: #{tpu_custom_call.1} parent=11 // pred_fallthru
        _
      // Predicated region
      $region17: #{tpu_custom_call.1} parent=11 // pred_check
        %p121 = pneg %p77
      $region18: #{tpu_custom_call.1} parent=11 // pred_check_branch
        %123 = sbr.rel (%p121) target = $region20
      $region19: #{tpu_custom_call.1} parent=11 // pred_region
        _
      $region20: #{tpu_custom_call.1} parent=11 // pred_fallthru
        _
    $region12: #{tpu_custom_call.1} parent=5 // pred_fallthru
      _
    %p124 = scmp.lt.s32.totalorder %s9, 4
    // Predicated region
    $region21: #{tpu_custom_call.1} parent=5 // pred_check
      %p125 = pneg %p124
    $region22: #{tpu_custom_call.1} parent=5 // pred_check_branch
      %127 = sbr.rel (%p125) target = $region24
    $region23: #{tpu_custom_call.1} parent=5 // pred_region
      // Predicated region
      $region25: #{tpu_custom_call.1} parent=23 // pred_check
        %p128 = pneg %p29
      $region26: #{tpu_custom_call.1} parent=23 // pred_check_branch
        %130 = sbr.rel (%p128) target = $region28
      $region27: #{tpu_custom_call.1} parent=23 // pred_region
        %s131 = smul.u32 4, %s9
        %p132 = scmp.lt.s32.totalorder %s131, 15
        %s133 = scalar_select %p132, %s131, 15
        %s134 = smul.addr %s133, 2
        %s135 = smul.addr %s134, 8
        %s136 = scalar_lea.vmem %s0, %s135
        %s137 = smul.u32 4, %s9
      $region28: #{tpu_custom_call.1} parent=23 // pred_fallthru
        _
    $region24: #{tpu_custom_call.1} parent=5 // pred_fallthru
      _
    %p138 = scmp.le.s32.totalorder 1, %s9
    %p139 = scmp.lt.s32.totalorder %s9, 5
    %p140 = pnand %p138, %p139
    %p141 = pneg %p140
    // Predicated region
    $region29: #{tpu_custom_call.1} parent=5 // pred_check
      _
    $region30: #{tpu_custom_call.1} parent=5 // pred_check_branch
      %143 = sbr.rel (%p140) target = $region32
    $region31: #{tpu_custom_call.1} parent=5 // pred_region
      %s144 = ssub.s32 %s9, 1
      %s145 = smul.u32 4, %s14
      %p146 = scmp.lt.s32.totalorder %s145, 15
      %s147 = scalar_select %p146, %s145, 15
      %s148 = smul.addr %s147, 2
      %s149 = smul.addr %s148, 8
      %s150 = scalar_lea.vmem %s0, %s149
      %p151 = pneg %p35
      %p152 = pneg %p32
      %p153 = pneg %p56
      %p154 = pneg %p53
      %p155 = pneg %p77
      %p156 = pneg %p74
      %p157 = pneg %p103
      %p158 = pneg %p100
      %s159 = smul.u32 4, %s14
      %p160 = scmp.lt.s32.totalorder %s159, 15
      %s161 = scalar_select %p160, %s159, 15
      %s162 = smul.addr %s161, 8
      %s163 = scalar_lea.vmem %s3, %s162
      %s164 = smul.u32 4, %s14
      %p165 = scmp.lt.s32.totalorder %s164, 15
      %s166 = scalar_select %p165, %s164, 15
      %s167 = smul.addr %s166, 2
      %s168 = smul.addr %s167, 8
      %s169 = scalar_lea.vmem %s0, %s168
      %s170 = smul.u32 4, %s14
      %s171 = smul.u32 4, %s14
      %p172 = scmp.lt.s32.totalorder %s171, 15
      %s173 = scalar_select %p172, %s171, 15
      %s174 = smul.addr %s173, 8
      %s175 = scalar_lea.vmem %s3, %s174
      %s176 = smul.u32 4, %s14
      %v177 = vld [vmem:[%s169] sm:$0xff]
      %v178 = vld [vmem:[%s169 + $0x8] sm:$0xff]
      %v179 = vld [vmem:[%s169 + $0x10] sm:$0xff]
      %v180 = vld [vmem:[%s169 + $0x18] sm:$0xff]
      %v181 = vld [vmem:[%s169 + $0x20] sm:$0xff]
      %v182 = vld [vmem:[%s169 + $0x28] sm:$0xff]
      %v183 = vld [vmem:[%s169 + $0x30] sm:$0xff]
      %v184 = vld [vmem:[%s169 + $0x38] sm:$0xff]
      %vm185 = vcmask 64512
      %v186 = vsel %vm185, %v177, 0.0
      %187 = vadd.xlane.f32.xlu0 %v186
      %v188 = vpop.xlane.xlu0 %187
      %v189 = vsel %vm185, %v179, 0.0
      %190 = vadd.xlane.f32.xlu0 %v189
      %v191 = vpop.xlane.xlu0 %190
      %v192 = vsel %vm185, %v181, 0.0
      %193 = vadd.xlane.f32.xlu0 %v192
      %v194 = vpop.xlane.xlu0 %193
      %v195 = vsel %vm185, %v183, 0.0
      %196 = vadd.xlane.f32.xlu0 %v195
      %v197 = vpop.xlane.xlu0 %196
      %v198 = vsel %vm185, %v178, 0.0
      %199 = vadd.xlane.f32.xlu0 %v198
      %v200 = vpop.xlane.xlu0 %199
      %v201 = vsel %vm185, %v180, 0.0
      %202 = vadd.xlane.f32.xlu0 %v201
      %v203 = vpop.xlane.xlu0 %202
      %v204 = vsel %vm185, %v182, 0.0
      %205 = vadd.xlane.f32.xlu0 %v204
      %v206 = vpop.xlane.xlu0 %205
      %v207 = vsel %vm185, %v184, 0.0
      %208 = vadd.xlane.f32.xlu0 %v207
      %v209 = vpop.xlane.xlu0 %208
      %v210 = vadd.f32 %v188, %v200
      %v211 = vadd.f32 %v191, %v203
      %v212 = vadd.f32 %v194, %v206
      %v213 = vadd.f32 %v197, %v209
      %v214 = vmul.f32 %v210, 0.0625
      %v215 = vmul.f32 %v211, 0.0625
      %v216 = vmul.f32 %v212, 0.0625
      %v217 = vmul.f32 %v213, 0.0625
      %v218 = vsub.f32 %v177, %v214
      %v219 = vsub.f32 %v179, %v215
      %v220 = vsub.f32 %v181, %v216
      %v221 = vsub.f32 %v183, %v217
      %v222 = vsub.f32 %v178, %v214
      %v223 = vsub.f32 %v180, %v215
      %v224 = vsub.f32 %v182, %v216
      %v225 = vsub.f32 %v184, %v217
      %v226 = vmul.f32 %v218, %v218
      %v227 = vmul.f32 %v219, %v219
      %v228 = vmul.f32 %v220, %v220
      %v229 = vmul.f32 %v221, %v221
      %v230 = vsel %vm185, %v226, 0.0
      %231 = vadd.xlane.f32.xlu0 %v230
      %v232 = vpop.xlane.xlu0 %231
      %v233 = vsel %vm185, %v227, 0.0
      %234 = vadd.xlane.f32.xlu0 %v233
      %v235 = vpop.xlane.xlu0 %234
      %v236 = vsel %vm185, %v228, 0.0
      %237 = vadd.xlane.f32.xlu0 %v236
      %v238 = vpop.xlane.xlu0 %237
      %v239 = vsel %vm185, %v229, 0.0
      %240 = vadd.xlane.f32.xlu0 %v239
      %v241 = vpop.xlane.xlu0 %240
      %v242 = vmul.f32 %v222, %v222
      %v243 = vmul.f32 %v223, %v223
      %v244 = vmul.f32 %v224, %v224
      %v245 = vmul.f32 %v225, %v225
      %v246 = vsel %vm185, %v242, 0.0
      %247 = vadd.xlane.f32.xlu0 %v246
      %v248 = vpop.xlane.xlu0 %247
      %v249 = vsel %vm185, %v243, 0.0
      %250 = vadd.xlane.f32.xlu0 %v249
      %v251 = vpop.xlane.xlu0 %250
      %v252 = vsel %vm185, %v244, 0.0
      %253 = vadd.xlane.f32.xlu0 %v252
      %v254 = vpop.xlane.xlu0 %253
      %v255 = vsel %vm185, %v245, 0.0
      %256 = vadd.xlane.f32.xlu0 %v255
      %v257 = vpop.xlane.xlu0 %256
      %v258 = vadd.f32 %v232, %v248
      %v259 = vadd.f32 %v235, %v251
      %v260 = vadd.f32 %v238, %v254
      %v261 = vadd.f32 %v241, %v257
      %v262 = vmul.f32 %v258, 0.0625
      %v263 = vmul.f32 %v259, 0.0625
      %v264 = vmul.f32 %v260, 0.0625
      %v265 = vmul.f32 %v261, 0.0625
      %v266 = vadd.f32 %v262, 1e-05
      %v267 = vadd.f32 %v263, 1e-05
      %v268 = vadd.f32 %v264, 1e-05
      %v269 = vadd.f32 %v265, 1e-05
      %v270 = vrsqrt.pop %v266
      %v271 = vrsqrt.pop %v267
      %v272 = vrsqrt.pop %v268
      %v273 = vrsqrt.pop %v269
      %v274 = vld [vmem:[%s1] sm:$0xff]
      %v275 = vld [vmem:[%s1 + $0x8] sm:$0xff]
      %v277 = vsel %vm185, %v222, 0
      %v280 = vsel %vm185, %v223, 0
      %v283 = vsel %vm185, %v224, 0
      %v286 = vsel %vm185, %v225, 0
      %288 = vmatprep.subr.mxu0 0.0
      %289 = vmatpush1.msra.mxu0 %v275
      %290 = vmatprep.subr.mxu0 0.0
      %291 = vmatpush1.msra.mxu0 0.0
      %292 = vmatprep.subr.mxu0 0.0
      %293 = vmatpush1.msra.mxu0 0.0
      %294 = vmatprep.subr.mxu0 0.0
      %295 = vmatpush1.msra.mxu0 0.0
      %296 = vmatprep.subr.mxu0 0.0
      %297 = vmatpush1.msra.mxu0 0.0
      %298 = vmatprep.subr.mxu0 0.0
      %299 = vmatpush1.msra.mxu0 0.0
      %300 = vmatprep.subr.mxu0 0.0
      %301 = vmatpush1.msra.mxu0 0.0
      %302 = vmatprep.subr.mxu0 0.0
      %303 = vmatpush1.msra.mxu0 0.0
      %304 = vmatprep.subr.mxu0 0.0
      %305 = vmatpush1.msra.mxu0 0.0
      %306 = vmatprep.subr.mxu0 0.0
      %307 = vmatpush1.msra.mxu0 0.0
      %308 = vmatprep.subr.mxu0 0.0
      %309 = vmatpush1.msra.mxu0 0.0
      %310 = vmatprep.subr.mxu0 0.0
      %311 = vmatpush1.msra.mxu0 0.0
      %312 = vmatprep.subr.mxu0 0.0
      %313 = vmatpush1.msra.mxu0 0.0
      %314 = vmatprep.subr.mxu0 0.0
      %315 = vmatpush1.msra.mxu0 0.0
      %316 = vmatprep.subr.mxu0 0.0
      %317 = vmatpush1.msra.mxu0 0.0
      %318 = vmatprep.subr.mxu0 0.0
      %319 = vmatpush1.msra.mxu0 0.0
      %320 = vmatprep.subr.mxu0 0.0
      %321 = vmatpush1.msra.mxu0 0.0
      %322 = vmatprep.subr.mxu0 0.0
      %323 = vmatpush1.msra.mxu0 0.0
      %324 = vmatprep.subr.mxu0 0.0
      %325 = vmatpush1.msra.mxu0 0.0
      %326 = vmatprep.subr.mxu0 0.0
      %327 = vmatpush1.msra.mxu0 0.0
      %328 = vmatprep.subr.mxu0 0.0
      %329 = vmatpush1.msra.mxu0 0.0
      %330 = vmatprep.subr.mxu0 0.0
      %331 = vmatpush1.msra.mxu0 0.0
      %332 = vmatprep.subr.mxu0 0.0
      %333 = vmatpush1.msra.mxu0 0.0
      %334 = vmatprep.subr.mxu0 0.0
      %335 = vmatpush1.msra.mxu0 0.0
      %336 = vmatprep.subr.mxu0 0.0
      %337 = vmatpush1.msra.mxu0 0.0
      %338 = vmatprep.subr.mxu0 0.0
      %339 = vmatpush1.msra.mxu0 0.0
      %340 = vmatprep.subr.mxu0 0.0
      %341 = vmatpush1.msra.mxu0 0.0
      %342 = vmatprep.subr.mxu0 0.0
      %343 = vmatpush1.msra.mxu0 0.0
      %344 = vmatprep.subr.mxu0 0.0
      %345 = vmatpush1.msra.mxu0 0.0
      %346 = vmatprep.subr.mxu0 0.0
      %347 = vmatpush1.msra.mxu0 0.0
      %348 = vmatprep.subr.mxu0 0.0
      %349 = vmatpush1.msra.mxu0 0.0
      %350 = vmatprep.subr.mxu0 0.0
      %351 = vmatpush1.msra.mxu0 0.0
      %352 = vmatprep.mubr.f32.mxu0 0.0
      %353 = vmatmul.mubr.f32.gmra.mrb[0].mxu0 %v277
      %v354 = vpop.f32.mrb[0].mxu0
      %v355 = vadd.f32 0.0, %v354
      %v356 = vpop.f32.mrb[0].mxu0
      %357 = vmatprep.mubr.f32.mxu0 0.0
      %358 = vmatmul.mubr.f32.gmra.mrb[0].mxu0 %v280
      %v359 = vpop.f32.mrb[0].mxu0
      %v360 = vadd.f32 0.0, %v359
      %v361 = vpop.f32.mrb[0].mxu0
      %362 = vmatprep.mubr.f32.mxu0 0.0
      %363 = vmatmul.mubr.f32.gmra.mrb[0].mxu0 %v283
      %v364 = vpop.f32.mrb[0].mxu0
      %v365 = vadd.f32 0.0, %v364
      %v366 = vpop.f32.mrb[0].mxu0
      %367 = vmatprep.mubr.f32.mxu0 0.0
      %368 = vmatmul.mubr.f32.gmra.mrb[0].mxu0 %v286
      %v369 = vpop.f32.mrb[0].mxu0
      %v370 = vadd.f32 0.0, %v369
      %v371 = vpop.f32.mrb[0].mxu0
      %372 = vdwg.mxu0
      %v374 = vsel %vm185, %v218, 0
      %v377 = vsel %vm185, %v219, 0
      %v380 = vsel %vm185, %v220, 0
      %v383 = vsel %vm185, %v221, 0
      %385 = vmatprep.subr.mxu0 0.0
      %386 = vmatpush1.msra.mxu0 %v274
      %387 = vmatprep.subr.mxu0 0.0
      %388 = vmatpush1.msra.mxu0 0.0
      %389 = vmatprep.subr.mxu0 0.0
      %390 = vmatpush1.msra.mxu0 0.0
      %391 = vmatprep.subr.mxu0 0.0
      %392 = vmatpush1.msra.mxu0 0.0
      %393 = vmatprep.subr.mxu0 0.0
      %394 = vmatpush1.msra.mxu0 0.0
      %395 = vmatprep.subr.mxu0 0.0
      %396 = vmatpush1.msra.mxu0 0.0
      %397 = vmatprep.subr.mxu0 0.0
      %398 = vmatpush1.msra.mxu0 0.0
      %399 = vmatprep.subr.mxu0 0.0
      %400 = vmatpush1.msra.mxu0 0.0
      %401 = vmatprep.subr.mxu0 0.0
      %402 = vmatpush1.msra.mxu0 0.0
      %403 = vmatprep.subr.mxu0 0.0
      %404 = vmatpush1.msra.mxu0 0.0
      %405 = vmatprep.subr.mxu0 0.0
      %406 = vmatpush1.msra.mxu0 0.0
      %407 = vmatprep.subr.mxu0 0.0
      %408 = vmatpush1.msra.mxu0 0.0
      %409 = vmatprep.subr.mxu0 0.0
      %410 = vmatpush1.msra.mxu0 0.0
      %411 = vmatprep.subr.mxu0 0.0
      %412 = vmatpush1.msra.mxu0 0.0
      %413 = vmatprep.subr.mxu0 0.0
      %414 = vmatpush1.msra.mxu0 0.0
      %415 = vmatprep.subr.mxu0 0.0
      %416 = vmatpush1.msra.mxu0 0.0
      %417 = vmatprep.subr.mxu0 0.0
      %418 = vmatpush1.msra.mxu0 0.0
      %419 = vmatprep.subr.mxu0 0.0
      %420 = vmatpush1.msra.mxu0 0.0
      %421 = vmatprep.subr.mxu0 0.0
      %422 = vmatpush1.msra.mxu0 0.0
      %423 = vmatprep.subr.mxu0 0.0
      %424 = vmatpush1.msra.mxu0 0.0
      %425 = vmatprep.subr.mxu0 0.0
      %426 = vmatpush1.msra.mxu0 0.0
      %427 = vmatprep.subr.mxu0 0.0
      %428 = vmatpush1.msra.mxu0 0.0
      %429 = vmatprep.subr.mxu0 0.0
      %430 = vmatpush1.msra.mxu0 0.0
      %431 = vmatprep.subr.mxu0 0.0
      %432 = vmatpush1.msra.mxu0 0.0
      %433 = vmatprep.subr.mxu0 0.0
      %434 = vmatpush1.msra.mxu0 0.0
      %435 = vmatprep.subr.mxu0 0.0
      %436 = vmatpush1.msra.mxu0 0.0
      %437 = vmatprep.subr.mxu0 0.0
      %438 = vmatpush1.msra.mxu0 0.0
      %439 = vmatprep.subr.mxu0 0.0
      %440 = vmatpush1.msra.mxu0 0.0
      %441 = vmatprep.subr.mxu0 0.0
      %442 = vmatpush1.msra.mxu0 0.0
      %443 = vmatprep.subr.mxu0 0.0
      %444 = vmatpush1.msra.mxu0 0.0
      %445 = vmatprep.subr.mxu0 0.0
      %446 = vmatpush1.msra.mxu0 0.0
      %447 = vmatprep.subr.mxu0 0.0
      %448 = vmatpush1.msra.mxu0 0.0
      %449 = vmatprep.mubr.f32.mxu0 0.0
      %450 = vmatmul.mubr.f32.gmra.mrb[0].mxu0 %v374
      %v451 = vpop.f32.mrb[0].mxu0
      %v452 = vadd.f32 %v355, %v451
      %v453 = vpop.f32.mrb[0].mxu0
      %454 = vmatprep.mubr.f32.mxu0 0.0
      %455 = vmatmul.mubr.f32.gmra.mrb[0].mxu0 %v377
      %v456 = vpop.f32.mrb[0].mxu0
      %v457 = vadd.f32 %v360, %v456
      %v458 = vpop.f32.mrb[0].mxu0
      %459 = vmatprep.mubr.f32.mxu0 0.0
      %460 = vmatmul.mubr.f32.gmra.mrb[0].mxu0 %v380
      %v461 = vpop.f32.mrb[0].mxu0
      %v462 = vadd.f32 %v365, %v461
      %v463 = vpop.f32.mrb[0].mxu0
      %464 = vmatprep.mubr.f32.mxu0 0.0
      %465 = vmatmul.mubr.f32.gmra.mrb[0].mxu0 %v383
      %v466 = vpop.f32.mrb[0].mxu0
      %v467 = vadd.f32 %v370, %v466
      %v468 = vpop.f32.mrb[0].mxu0
      %469 = vdwg.mxu0
      %v470 = vmul.f32 %v452, %v270
      %v471 = vmul.f32 %v457, %v271
      %v472 = vmul.f32 %v462, %v272
      %v473 = vmul.f32 %v467, %v273
      %v474 = vld [vmem:[%s2] sm:$0x1]
      %v476 = vlaneseq
      %v477 = vshrl.u32 %v476, 7
      %v478 = vsub.s32 0, %v477
      %v479 = vrot.slane %v474, %v478
      %v481 = vadd.f32 %v470, %v479
      %v482 = vadd.f32 %v471, %v479
      %v483 = vadd.f32 %v472, %v479
      %v484 = vadd.f32 %v473, %v479
      %485 = vst.msk [vmem:[%s175] sm:$0xff] %vm185, %v481
      %486 = vst.msk [vmem:[%s175 + $0x8] sm:$0xff] %vm185, %v482
      %487 = vst.msk [vmem:[%s175 + $0x10] sm:$0xff] %vm185, %v483
      %488 = vst.msk [vmem:[%s175 + $0x18] sm:$0xff] %vm185, %v484
      %s489 = smul.u32 4, %s14
      %p490 = scmp.lt.s32.totalorder %s489, 15
      %s491 = scalar_select %p490, %s489, 15
      %s492 = smul.addr %s491, 8
      %s493 = scalar_lea.vmem %s3, %s492
      // Predicated region
      $region33: #{tpu_custom_call.1} parent=31 // pred_check
        %p494 = pneg %p100
      $region34: #{tpu_custom_call.1} parent=31 // pred_check_branch
        %496 = sbr.rel (%p494) target = $region36
      $region35: #{tpu_custom_call.1} parent=31 // pred_region
        %s497 = smul.u32 4, %s14
      $region36: #{tpu_custom_call.1} parent=31 // pred_fallthru
        _
    $region32: #{tpu_custom_call.1} parent=5 // pred_fallthru
      _
    %p498 = scmp.le.s32.totalorder 2, %s9
    // Predicated region
    $region37: #{tpu_custom_call.1} parent=5 // pred_check
      %p499 = pneg %p498
    $region38: #{tpu_custom_call.1} parent=5 // pred_check_branch
      %501 = sbr.rel (%p499) target = $region40
    $region39: #{tpu_custom_call.1} parent=5 // pred_region
      %s502 = ssub.s32 %s9, 2
      // Predicated region
      $region41: #{tpu_custom_call.1} parent=39 // pred_check
        %p503 = pneg %p106
      $region42: #{tpu_custom_call.1} parent=39 // pred_check_branch
        %505 = sbr.rel (%p503) target = $region44
      $region43: #{tpu_custom_call.1} parent=39 // pred_region
        %s506 = smul.u32 4, %s15
        %p507 = scmp.lt.s32.totalorder %s506, 15
        %s508 = scalar_select %p507, %s506, 15
        %s509 = smul.addr %s508, 8
        %s510 = scalar_lea.vmem %s3, %s509
      $region44: #{tpu_custom_call.1} parent=39 // pred_fallthru
        _
    $region40: #{tpu_custom_call.1} parent=5 // pred_fallthru
      _
  $region6: #{tpu_custom_call.1} parent=0 // loop_footer
    %s13 = sadd.s32 1, %s9
  $region7: #{tpu_custom_call.1} parent=0 // loop_footer_branch
    %8 = sbr.rel target = $region3
  $region8: #{tpu_custom_call.1} parent=0 // loop_exit
    _

// kernel: tpu_custom_call.1
$region0: #{tpu_custom_call.1}
  #allocation0 [shape = 'u32[]', space=smem, size = 0x4, offset = 0x4, fixed_abs, tag = 'smem constant byte address 0x4 - core index']
  #allocation1 [shape = 'u32[144,128]{1,0:T(1,128)}', space=vmem, size = 0x12000, scoped, tag = 'internal scratch']
  %s0 = inlined_call_operand.vmem [shape: f32[16,2,8,8], index: 0, kind: input, shape index: {}]
  %s1 = inlined_call_operand.vmem [shape: f32[16,8], index: 1, kind: input, shape index: {}]
  %s2 = inlined_call_operand.vmem [shape: f32[1,8], index: 2, kind: input, shape index: {}]
  %s3 = inlined_call_operand.vmem [shape: f32[128,8], index: 3, kind: output, shape index: {}]
  %s4 = sld [smem:[#allocation0]]
  $region45: #{tpu_custom_call.1} parent=0
    _
  %s6 = ssub.s32 1, %s4
  %s7 = scalar_select 0, %s6, %s4
  loop: start=0, step=1, limit=6
  $region2: #{tpu_custom_call.1} parent=0 // loop_pre_header
    _
  $region3: #{tpu_custom_call.1} parent=0 // loop_header
    %s9 = sphi 0, %s13
    %p10 = scmp.ge.s32.totalorder %s9, 6
    %s19 = sphi 0, %s21
    %s22 = sphi 0, %s19
    %s23 = sphi 0, %s22
    %s39 = sphi 0, %s23
    %s43 = sphi 0, %s43
    %s45 = sphi 0, %s43
    %s46 = sphi 0, %s45
    %s60 = sphi 0, %s46
    %s64 = sphi 0, %s64
    %s66 = sphi 0, %s64
    %s67 = sphi 0, %s66
    %s81 = sphi 0, %s67
    %s87 = sphi 0, %s89
    %s90 = sphi 0, %s87
    %s91 = sphi 0, %s90
    %s107 = sphi 0, %s91
  $region4: #{tpu_custom_call.1} parent=0 // loop_header_branch
    %12 = sbr.rel (%p10) target = $region8
  $region5: #{tpu_custom_call.1} parent=0 // loop_body
    %s14 = ssub.s32 %s9, 1
    %s15 = ssub.s32 %s9, 2
    %s16 = sadd.s32 %s9, 1
    %s17 = ssub.s32 %s9, %s16
    %p18 = scmp.eq.s32.totalorder %s17, 0
    %s20 = sadd.s32 %s19, 1
    %s21 = scalar_select %p18, %s19, %s20
    %p24 = pneg %p18
    %p25 = scmp.eq.s32.totalorder %s9, 3
    %p26 = por %p24, %p25
    %p27 = scmp.ne.s32.totalorder %s19, %s22
    %p28 = scmp.eq.s32.totalorder %s9, 0
    %p29 = por %p27, %p28
    %p30 = scmp.ne.s32.totalorder %s19, %s22
    %p31 = scmp.eq.s32.totalorder %s14, 3
    %p32 = por %p30, %p31
    %p33 = scmp.ne.s32.totalorder %s22, %s23
    %p34 = scmp.eq.s32.totalorder %s14, 0
    %p35 = por %p33, %p34
    %p36 = scmp.ne.s32.totalorder %s22, %s23
    %p37 = scmp.eq.s32.totalorder %s15, 3
    %p38 = por %p36, %p37
    %p40 = scmp.ne.s32.totalorder %s23, %s39
    %p41 = scmp.eq.s32.totalorder %s15, 0
    %p42 = por %p40, %p41
    %s44 = sadd.s32 %s43, 1
    %p47 = scmp.eq.s32.totalorder %s9, 3
    %p48 = scmp.ne.s32.totalorder %s43, %s45
    %p49 = scmp.eq.s32.totalorder %s9, 0
    %p50 = por %p48, %p49
    %p51 = scmp.ne.s32.totalorder %s43, %s45
    %p52 = scmp.eq.s32.totalorder %s14, 3
    %p53 = por %p51, %p52
    %p54 = scmp.ne.s32.totalorder %s45, %s46
    %p55 = scmp.eq.s32.totalorder %s14, 0
    %p56 = por %p54, %p55
    %p57 = scmp.ne.s32.totalorder %s45, %s46
    %p58 = scmp.eq.s32.totalorder %s15, 3
    %p59 = por %p57, %p58
    %p61 = scmp.ne.s32.totalorder %s46, %s60
    %p62 = scmp.eq.s32.totalorder %s15, 0
    %p63 = por %p61, %p62
    %s65 = sadd.s32 %s64, 1
    %p68 = scmp.eq.s32.totalorder %s9, 3
    %p69 = scmp.ne.s32.totalorder %s64, %s66
    %p70 = scmp.eq.s32.totalorder %s9, 0
    %p71 = por %p69, %p70
    %p72 = scmp.ne.s32.totalorder %s64, %s66
    %p73 = scmp.eq.s32.totalorder %s14, 3
    %p74 = por %p72, %p73
    %p75 = scmp.ne.s32.totalorder %s66, %s67
    %p76 = scmp.eq.s32.totalorder %s14, 0
    %p77 = por %p75, %p76
    %p78 = scmp.ne.s32.totalorder %s66, %s67
    %p79 = scmp.eq.s32.totalorder %s15, 3
    %p80 = por %p78, %p79
    %p82 = scmp.ne.s32.totalorder %s67, %s81
    %p83 = scmp.eq.s32.totalorder %s15, 0
    %p84 = por %p82, %p83
    %s85 = ssub.s32 %s9, %s16
    %p86 = scmp.eq.s32.totalorder %s85, 0
    %s88 = sadd.s32 %s87, 1
    %s89 = scalar_select %p86, %s87, %s88
    %p92 = pneg %p86
    %p93 = scmp.eq.s32.totalorder %s9, 3
    %p94 = por %p92, %p93
    %p95 = scmp.ne.s32.totalorder %s87, %s90
    %p96 = scmp.eq.s32.totalorder %s9, 0
    %p97 = por %p95, %p96
    %p98 = scmp.ne.s32.totalorder %s87, %s90
    %p99 = scmp.eq.s32.totalorder %s14, 3
    %p100 = por %p98, %p99
    %p101 = scmp.ne.s32.totalorder %s90, %s91
    %p102 = scmp.eq.s32.totalorder %s14, 0
    %p103 = por %p101, %p102
    %p104 = scmp.ne.s32.totalorder %s90, %s91
    %p105 = scmp.eq.s32.totalorder %s15, 3
    %p106 = por %p104, %p105
    %p108 = scmp.ne.s32.totalorder %s91, %s107
    %p109 = scmp.eq.s32.totalorder %s15, 0
    %p110 = por %p108, %p109
    %p111 = scmp.le.s32.totalorder 1, %s9
    %p112 = scmp.lt.s32.totalorder %s9, 5
    %p113 = pnand %p111, %p112
    %p114 = pneg %p113
    // Predicated region
    $region9: #{tpu_custom_call.1} parent=5 // pred_check
      _
    $region10: #{tpu_custom_call.1} parent=5 // pred_check_branch
      %116 = sbr.rel (%p113) target = $region12
    $region11: #{tpu_custom_call.1} parent=5 // pred_region
      %s117 = ssub.s32 %s9, 1
      // Predicated region
      $region13: #{tpu_custom_call.1} parent=11 // pred_check
        %p118 = pneg %p56
      $region14: #{tpu_custom_call.1} parent=11 // pred_check_branch
        %120 = sbr.rel (%p118) target = $region16
      $region15: #{tpu_custom_call.1} parent=11 // pred_region
        _
      $region16: #{tpu_custom_call.1} parent=11 // pred_fallthru
        _
      // Predicated region
      $region17: #{tpu_custom_call.1} parent=11 // pred_check
        %p121 = pneg %p77
      $region18: #{tpu_custom_call.1} parent=11 // pred_check_branch
        %123 = sbr.rel (%p121) target = $region20
      $region19: #{tpu_custom_call.1} parent=11 // pred_region
        _
      $region20: #{tpu_custom_call.1} parent=11 // pred_fallthru
        _
    $region12: #{tpu_custom_call.1} parent=5 // pred_fallthru
      _
    %p124 = scmp.lt.s32.totalorder %s9, 4
    // Predicated region
    $region21: #{tpu_custom_call.1} parent=5 // pred_check
      %p125 = pneg %p124
    $region22: #{tpu_custom_call.1} parent=5 // pred_check_branch
      %127 = sbr.rel (%p125) target = $region24
    $region23: #{tpu_custom_call.1} parent=5 // pred_region
      // Predicated region
      $region25: #{tpu_custom_call.1} parent=23 // pred_check
        %p128 = pneg %p29
      $region26: #{tpu_custom_call.1} parent=23 // pred_check_branch
        %130 = sbr.rel (%p128) target = $region28
      $region27: #{tpu_custom_call.1} parent=23 // pred_region
        %s131 = smul.u32 4, %s9
        %p132 = scmp.lt.s32.totalorder %s131, 15
        %s133 = scalar_select %p132, %s131, 15
        %s134 = smul.addr %s133, 2
        %s135 = smul.addr %s134, 8
        %s136 = scalar_lea.vmem %s0, %s135
        %s137 = smul.u32 4, %s9
      $region28: #{tpu_custom_call.1} parent=23 // pred_fallthru
        _
    $region24: #{tpu_custom_call.1} parent=5 // pred_fallthru
      _
    %p138 = scmp.le.s32.totalorder 1, %s9
    %p139 = scmp.lt.s32.totalorder %s9, 5
    %p140 = pnand %p138, %p139
    %p141 = pneg %p140
    // Predicated region
    $region29: #{tpu_custom_call.1} parent=5 // pred_check
      _
    $region30: #{tpu_custom_call.1} parent=5 // pred_check_branch
      %143 = sbr.rel (%p140) target = $region32
    $region31: #{tpu_custom_call.1} parent=5 // pred_region
      %s144 = ssub.s32 %s9, 1
      %s145 = smul.u32 4, %s14
      %p146 = scmp.lt.s32.totalorder %s145, 15
      %s147 = scalar_select %p146, %s145, 15
      %s148 = smul.addr %s147, 2
      %s149 = smul.addr %s148, 8
      %s150 = scalar_lea.vmem %s0, %s149
      %p151 = pneg %p35
      %p152 = pneg %p32
      %p153 = pneg %p56
      %p154 = pneg %p53
      %p155 = pneg %p77
      %p156 = pneg %p74
      %p157 = pneg %p103
      %p158 = pneg %p100
      %s159 = smul.u32 4, %s14
      %p160 = scmp.lt.s32.totalorder %s159, 15
      %s161 = scalar_select %p160, %s159, 15
      %s162 = smul.addr %s161, 8
      %s163 = scalar_lea.vmem %s3, %s162
      %s164 = smul.u32 4, %s14
      %p165 = scmp.lt.s32.totalorder %s164, 15
      %s166 = scalar_select %p165, %s164, 15
      %s167 = smul.addr %s166, 2
      %s168 = smul.addr %s167, 8
      %s169 = scalar_lea.vmem %s0, %s168
      %s170 = smul.u32 4, %s14
      %s171 = smul.u32 4, %s14
      %p172 = scmp.lt.s32.totalorder %s171, 15
      %s173 = scalar_select %p172, %s171, 15
      %s174 = smul.addr %s173, 8
      %s175 = scalar_lea.vmem %s3, %s174
      %s176 = smul.u32 4, %s14
      %v177 = vld [vmem:[%s169] sm:$0xff]
      %v178 = vld [vmem:[%s169 + $0x8] sm:$0xff]
      %v179 = vld [vmem:[%s169 + $0x10] sm:$0xff]
      %v180 = vld [vmem:[%s169 + $0x18] sm:$0xff]
      %v181 = vld [vmem:[%s169 + $0x20] sm:$0xff]
      %v182 = vld [vmem:[%s169 + $0x28] sm:$0xff]
      %v183 = vld [vmem:[%s169 + $0x30] sm:$0xff]
      %v184 = vld [vmem:[%s169 + $0x38] sm:$0xff]
      %vm185 = vcmask 64512
      %v186 = vsel %vm185, %v177, 0.0
      %187 = vadd.xlane.f32.xlu0 %v186
      %v188 = vpop.xlane.xlu0 %187
      %v189 = vsel %vm185, %v179, 0.0
      %190 = vadd.xlane.f32.xlu0 %v189
      %v191 = vpop.xlane.xlu0 %190
      %v192 = vsel %vm185, %v181, 0.0
      %193 = vadd.xlane.f32.xlu0 %v192
      %v194 = vpop.xlane.xlu0 %193
      %v195 = vsel %vm185, %v183, 0.0
      %196 = vadd.xlane.f32.xlu0 %v195
      %v197 = vpop.xlane.xlu0 %196
      %v198 = vsel %vm185, %v178, 0.0
      %199 = vadd.xlane.f32.xlu0 %v198
      %v200 = vpop.xlane.xlu0 %199
      %v201 = vsel %vm185, %v180, 0.0
      %202 = vadd.xlane.f32.xlu0 %v201
      %v203 = vpop.xlane.xlu0 %202
      %v204 = vsel %vm185, %v182, 0.0
      %205 = vadd.xlane.f32.xlu0 %v204
      %v206 = vpop.xlane.xlu0 %205
      %v207 = vsel %vm185, %v184, 0.0
      %208 = vadd.xlane.f32.xlu0 %v207
      %v209 = vpop.xlane.xlu0 %208
      %v210 = vadd.f32 %v188, %v200
      %v211 = vadd.f32 %v191, %v203
      %v212 = vadd.f32 %v194, %v206
      %v213 = vadd.f32 %v197, %v209
      %v214 = vmul.f32 %v210, 0.0625
      %v215 = vmul.f32 %v211, 0.0625
      %v216 = vmul.f32 %v212, 0.0625
      %v217 = vmul.f32 %v213, 0.0625
      %v218 = vsub.f32 %v177, %v214
      %v219 = vsub.f32 %v179, %v215
      %v220 = vsub.f32 %v181, %v216
      %v221 = vsub.f32 %v183, %v217
      %v222 = vsub.f32 %v178, %v214
      %v223 = vsub.f32 %v180, %v215
      %v224 = vsub.f32 %v182, %v216
      %v225 = vsub.f32 %v184, %v217
      %v226 = vmul.f32 %v218, %v218
      %v227 = vmul.f32 %v219, %v219
      %v228 = vmul.f32 %v220, %v220
      %v229 = vmul.f32 %v221, %v221
      %v230 = vsel %vm185, %v226, 0.0
      %231 = vadd.xlane.f32.xlu0 %v230
      %v232 = vpop.xlane.xlu0 %231
      %v233 = vsel %vm185, %v227, 0.0
      %234 = vadd.xlane.f32.xlu0 %v233
      %v235 = vpop.xlane.xlu0 %234
      %v236 = vsel %vm185, %v228, 0.0
      %237 = vadd.xlane.f32.xlu0 %v236
      %v238 = vpop.xlane.xlu0 %237
      %v239 = vsel %vm185, %v229, 0.0
      %240 = vadd.xlane.f32.xlu0 %v239
      %v241 = vpop.xlane.xlu0 %240
      %v242 = vmul.f32 %v222, %v222
      %v243 = vmul.f32 %v223, %v223
      %v244 = vmul.f32 %v224, %v224
      %v245 = vmul.f32 %v225, %v225
      %v246 = vsel %vm185, %v242, 0.0
      %247 = vadd.xlane.f32.xlu0 %v246
      %v248 = vpop.xlane.xlu0 %247
      %v249 = vsel %vm185, %v243, 0.0
      %250 = vadd.xlane.f32.xlu0 %v249
      %v251 = vpop.xlane.xlu0 %250
      %v252 = vsel %vm185, %v244, 0.0
      %253 = vadd.xlane.f32.xlu0 %v252
      %v254 = vpop.xlane.xlu0 %253
      %v255 = vsel %vm185, %v245, 0.0
      %256 = vadd.xlane.f32.xlu0 %v255
      %v257 = vpop.xlane.xlu0 %256
      %v258 = vadd.f32 %v232, %v248
      %v259 = vadd.f32 %v235, %v251
      %v260 = vadd.f32 %v238, %v254
      %v261 = vadd.f32 %v241, %v257
      %v262 = vmul.f32 %v258, 0.0625
      %v263 = vmul.f32 %v259, 0.0625
      %v264 = vmul.f32 %v260, 0.0625
      %v265 = vmul.f32 %v261, 0.0625
      %v266 = vadd.f32 %v262, 1e-05
      %v267 = vadd.f32 %v263, 1e-05
      %v268 = vadd.f32 %v264, 1e-05
      %v269 = vadd.f32 %v265, 1e-05
      %v270 = vrsqrt.pop %v266
      %v271 = vrsqrt.pop %v267
      %v272 = vrsqrt.pop %v268
      %v273 = vrsqrt.pop %v269
      %v274 = vld [vmem:[%s1] sm:$0xff]
      %v275 = vld [vmem:[%s1 + $0x8] sm:$0xff]
      %v277 = vsel %vm185, %v222, 0
      %v280 = vsel %vm185, %v223, 0
      %v283 = vsel %vm185, %v224, 0
      %v286 = vsel %vm185, %v225, 0
      %288 = vmatprep.subr.mxu0 0.0
      %289 = vmatpush1.msra.mxu0 %v275
      %290 = vmatprep.subr.mxu0 0.0
      %291 = vmatpush1.msra.mxu0 0.0
      %292 = vmatprep.subr.mxu0 0.0
      %293 = vmatpush1.msra.mxu0 0.0
      %294 = vmatprep.subr.mxu0 0.0
      %295 = vmatpush1.msra.mxu0 0.0
      %296 = vmatprep.subr.mxu0 0.0
      %297 = vmatpush1.msra.mxu0 0.0
      %298 = vmatprep.subr.mxu0 0.0
      %299 = vmatpush1.msra.mxu0 0.0
      %300 = vmatprep.subr.mxu0 0.0
      %301 = vmatpush1.msra.mxu0 0.0
      %302 = vmatprep.subr.mxu0 0.0
      %303 = vmatpush1.msra.mxu0 0.0
      %304 = vmatprep.subr.mxu0 0.0
      %305 = vmatpush1.msra.mxu0 0.0
      %306 = vmatprep.subr.mxu0 0.0
      %307 = vmatpush1.msra.mxu0 0.0
      %308 = vmatprep.subr.mxu0 0.0
      %309 = vmatpush1.msra.mxu0 0.0
      %310 = vmatprep.subr.mxu0 0.0
      %311 = vmatpush1.msra.mxu0 0.0
      %312 = vmatprep.subr.mxu0 0.0
      %313 = vmatpush1.msra.mxu0 0.0
      %314 = vmatprep.subr.mxu0 0.0
      %315 = vmatpush1.msra.mxu0 0.0
      %316 = vmatprep.subr.mxu0 0.0
      %317 = vmatpush1.msra.mxu0 0.0
      %318 = vmatprep.subr.mxu0 0.0
      %319 = vmatpush1.msra.mxu0 0.0
      %320 = vmatprep.subr.mxu0 0.0
      %321 = vmatpush1.msra.mxu0 0.0
      %322 = vmatprep.subr.mxu0 0.0
      %323 = vmatpush1.msra.mxu0 0.0
      %324 = vmatprep.subr.mxu0 0.0
      %325 = vmatpush1.msra.mxu0 0.0
      %326 = vmatprep.subr.mxu0 0.0
      %327 = vmatpush1.msra.mxu0 0.0
      %328 = vmatprep.subr.mxu0 0.0
      %329 = vmatpush1.msra.mxu0 0.0
      %330 = vmatprep.subr.mxu0 0.0
      %331 = vmatpush1.msra.mxu0 0.0
      %332 = vmatprep.subr.mxu0 0.0
      %333 = vmatpush1.msra.mxu0 0.0
      %334 = vmatprep.subr.mxu0 0.0
      %335 = vmatpush1.msra.mxu0 0.0
      %336 = vmatprep.subr.mxu0 0.0
      %337 = vmatpush1.msra.mxu0 0.0
      %338 = vmatprep.subr.mxu0 0.0
      %339 = vmatpush1.msra.mxu0 0.0
      %340 = vmatprep.subr.mxu0 0.0
      %341 = vmatpush1.msra.mxu0 0.0
      %342 = vmatprep.subr.mxu0 0.0
      %343 = vmatpush1.msra.mxu0 0.0
      %344 = vmatprep.subr.mxu0 0.0
      %345 = vmatpush1.msra.mxu0 0.0
      %346 = vmatprep.subr.mxu0 0.0
      %347 = vmatpush1.msra.mxu0 0.0
      %348 = vmatprep.subr.mxu0 0.0
      %349 = vmatpush1.msra.mxu0 0.0
      %350 = vmatprep.subr.mxu0 0.0
      %351 = vmatpush1.msra.mxu0 0.0
      %352 = vmatprep.mubr.f32.mxu0 0.0
      %353 = vmatmul.mubr.f32.gmra.mrb[0].mxu0 %v277
      %v354 = vpop.f32.mrb[0].mxu0
      %v355 = vadd.f32 0.0, %v354
      %v356 = vpop.f32.mrb[0].mxu0
      %357 = vmatprep.mubr.f32.mxu0 0.0
      %358 = vmatmul.mubr.f32.gmra.mrb[0].mxu0 %v280
      %v359 = vpop.f32.mrb[0].mxu0
      %v360 = vadd.f32 0.0, %v359
      %v361 = vpop.f32.mrb[0].mxu0
      %362 = vmatprep.mubr.f32.mxu0 0.0
      %363 = vmatmul.mubr.f32.gmra.mrb[0].mxu0 %v283
      %v364 = vpop.f32.mrb[0].mxu0
      %v365 = vadd.f32 0.0, %v364
      %v366 = vpop.f32.mrb[0].mxu0
      %367 = vmatprep.mubr.f32.mxu0 0.0
      %368 = vmatmul.mubr.f32.gmra.mrb[0].mxu0 %v286
      %v369 = vpop.f32.mrb[0].mxu0
      %v370 = vadd.f32 0.0, %v369
      %v371 = vpop.f32.mrb[0].mxu0
      %372 = vdwg.mxu0
      %v374 = vsel %vm185, %v218, 0
      %v377 = vsel %vm185, %v219, 0
      %v380 = vsel %vm185, %v220, 0
      %v383 = vsel %vm185, %v221, 0
      %385 = vmatprep.subr.mxu0 0.0
      %386 = vmatpush1.msra.mxu0 %v274
      %387 = vmatprep.subr.mxu0 0.0
      %388 = vmatpush1.msra.mxu0 0.0
      %389 = vmatprep.subr.mxu0 0.0
      %390 = vmatpush1.msra.mxu0 0.0
      %391 = vmatprep.subr.mxu0 0.0
      %392 = vmatpush1.msra.mxu0 0.0
      %393 = vmatprep.subr.mxu0 0.0
      %394 = vmatpush1.msra.mxu0 0.0
      %395 = vmatprep.subr.mxu0 0.0
      %396 = vmatpush1.msra.mxu0 0.0
      %397 = vmatprep.subr.mxu0 0.0
      %398 = vmatpush1.msra.mxu0 0.0
      %399 = vmatprep.subr.mxu0 0.0
      %400 = vmatpush1.msra.mxu0 0.0
      %401 = vmatprep.subr.mxu0 0.0
      %402 = vmatpush1.msra.mxu0 0.0
      %403 = vmatprep.subr.mxu0 0.0
      %404 = vmatpush1.msra.mxu0 0.0
      %405 = vmatprep.subr.mxu0 0.0
      %406 = vmatpush1.msra.mxu0 0.0
      %407 = vmatprep.subr.mxu0 0.0
      %408 = vmatpush1.msra.mxu0 0.0
      %409 = vmatprep.subr.mxu0 0.0
      %410 = vmatpush1.msra.mxu0 0.0
      %411 = vmatprep.subr.mxu0 0.0
      %412 = vmatpush1.msra.mxu0 0.0
      %413 = vmatprep.subr.mxu0 0.0
      %414 = vmatpush1.msra.mxu0 0.0
      %415 = vmatprep.subr.mxu0 0.0
      %416 = vmatpush1.msra.mxu0 0.0
      %417 = vmatprep.subr.mxu0 0.0
      %418 = vmatpush1.msra.mxu0 0.0
      %419 = vmatprep.subr.mxu0 0.0
      %420 = vmatpush1.msra.mxu0 0.0
      %421 = vmatprep.subr.mxu0 0.0
      %422 = vmatpush1.msra.mxu0 0.0
      %423 = vmatprep.subr.mxu0 0.0
      %424 = vmatpush1.msra.mxu0 0.0
      %425 = vmatprep.subr.mxu0 0.0
      %426 = vmatpush1.msra.mxu0 0.0
      %427 = vmatprep.subr.mxu0 0.0
      %428 = vmatpush1.msra.mxu0 0.0
      %429 = vmatprep.subr.mxu0 0.0
      %430 = vmatpush1.msra.mxu0 0.0
      %431 = vmatprep.subr.mxu0 0.0
      %432 = vmatpush1.msra.mxu0 0.0
      %433 = vmatprep.subr.mxu0 0.0
      %434 = vmatpush1.msra.mxu0 0.0
      %435 = vmatprep.subr.mxu0 0.0
      %436 = vmatpush1.msra.mxu0 0.0
      %437 = vmatprep.subr.mxu0 0.0
      %438 = vmatpush1.msra.mxu0 0.0
      %439 = vmatprep.subr.mxu0 0.0
      %440 = vmatpush1.msra.mxu0 0.0
      %441 = vmatprep.subr.mxu0 0.0
      %442 = vmatpush1.msra.mxu0 0.0
      %443 = vmatprep.subr.mxu0 0.0
      %444 = vmatpush1.msra.mxu0 0.0
      %445 = vmatprep.subr.mxu0 0.0
      %446 = vmatpush1.msra.mxu0 0.0
      %447 = vmatprep.subr.mxu0 0.0
      %448 = vmatpush1.msra.mxu0 0.0
      %449 = vmatprep.mubr.f32.mxu0 0.0
      %450 = vmatmul.mubr.f32.gmra.mrb[0].mxu0 %v374
      %v451 = vpop.f32.mrb[0].mxu0
      %v452 = vadd.f32 %v355, %v451
      %v453 = vpop.f32.mrb[0].mxu0
      %454 = vmatprep.mubr.f32.mxu0 0.0
      %455 = vmatmul.mubr.f32.gmra.mrb[0].mxu0 %v377
      %v456 = vpop.f32.mrb[0].mxu0
      %v457 = vadd.f32 %v360, %v456
      %v458 = vpop.f32.mrb[0].mxu0
      %459 = vmatprep.mubr.f32.mxu0 0.0
      %460 = vmatmul.mubr.f32.gmra.mrb[0].mxu0 %v380
      %v461 = vpop.f32.mrb[0].mxu0
      %v462 = vadd.f32 %v365, %v461
      %v463 = vpop.f32.mrb[0].mxu0
      %464 = vmatprep.mubr.f32.mxu0 0.0
      %465 = vmatmul.mubr.f32.gmra.mrb[0].mxu0 %v383
      %v466 = vpop.f32.mrb[0].mxu0
      %v467 = vadd.f32 %v370, %v466
      %v468 = vpop.f32.mrb[0].mxu0
      %469 = vdwg.mxu0
      %v470 = vmul.f32 %v452, %v270
      %v471 = vmul.f32 %v457, %v271
      %v472 = vmul.f32 %v462, %v272
      %v473 = vmul.f32 %v467, %v273
      %v474 = vld [vmem:[%s2] sm:$0x1]
      %v476 = vlaneseq
      %v477 = vshrl.u32 %v476, 7
      %v478 = vsub.s32 0, %v477
      %v479 = vrot.slane %v474, %v478
      %v481 = vadd.f32 %v470, %v479
      %v482 = vadd.f32 %v471, %v479
      %v483 = vadd.f32 %v472, %v479
      %v484 = vadd.f32 %v473, %v479
      %485 = vst.msk [vmem:[%s175] sm:$0xff] %vm185, %v481
      %486 = vst.msk [vmem:[%s175 + $0x8] sm:$0xff] %vm185, %v482
      %487 = vst.msk [vmem:[%s175 + $0x10] sm:$0xff] %vm185, %v483
      %488 = vst.msk [vmem:[%s175 + $0x18] sm:$0xff] %vm185, %v484
      %s489 = smul.u32 4, %s14
      %p490 = scmp.lt.s32.totalorder %s489, 15
      %s491 = scalar_select %p490, %s489, 15
      %s492 = smul.addr %s491, 8
      %s493 = scalar_lea.vmem %s3, %s492
      // Predicated region
      $region33: #{tpu_custom_call.1} parent=31 // pred_check
        %p494 = pneg %p100
      $region34: #{tpu_custom_call.1} parent=31 // pred_check_branch
        %496 = sbr.rel (%p494) target = $region36
      $region35: #{tpu_custom_call.1} parent=31 // pred_region
        %s497 = smul.u32 4, %s14
      $region36: #{tpu_custom_call.1} parent=31 // pred_fallthru
        _
    $region32: #{tpu_custom_call.1} parent=5 // pred_fallthru
      _
    %p498 = scmp.le.s32.totalorder 2, %s9
    // Predicated region
    $region37: #{tpu_custom_call.1} parent=5 // pred_check
      %p499 = pneg %p498
    $region38: #{tpu_custom_call.1} parent=5 // pred_check_branch
      %501 = sbr.rel (%p499) target = $region40
    $region39: #{tpu_custom_call.1} parent=5 // pred_region
      %s502 = ssub.s32 %s9, 2
      // Predicated region
      $region41: #{tpu_custom_call.1} parent=39 // pred_check
        %p503 = pneg %p106
      $region42: #{tpu_custom_call.1} parent=39 // pred_check_branch
        %505 = sbr.rel (%p503) target = $region44
      $region43: #{tpu_custom_call.1} parent=39 // pred_region
        %s506 = smul.u32 4, %s15
        %p507 = scmp.lt.s32.totalorder %s506, 15
        %s508 = scalar_select %p507, %s506, 15
        %s509 = smul.addr %s508, 8
        %s510 = scalar_lea.vmem %s3, %s509
      $region44: #{tpu_custom_call.1} parent=39 // pred_fallthru
        _
    $region40: #{tpu_custom_call.1} parent=5 // pred_fallthru
      _
  $region6: #{tpu_custom_call.1} parent=0 // loop_footer
    %s13 = sadd.s32 1, %s9
  $region7: #{tpu_custom_call.1} parent=0 // loop_footer_branch
    %8 = sbr.rel target = $region3
  $region8: #{tpu_custom_call.1} parent=0 // loop_exit
    _

</llo_original>
